<compile_context>
chip_gen: v5e
topology: v5e:2x2
jax: 0.10.0
libtpu: 0.0.40
codegen_flags: <defaults>
</compile_context>

<pallas_src>
import math

import jax
import jax.numpy as jnp
from jax.experimental import pallas as pl
from jax.experimental.pallas import tpu as pltpu

LN_EPS = 1e-5
LANE = 128
SUBLANE = 8


def _round_up(n, m):
    return ((n + m - 1) // m) * m


def _pad2(a, rows, cols):
    return jnp.pad(a, ((0, rows - a.shape[0]), (0, cols - a.shape[1])))


def _mxu_is_256():
    """True on chips with a 256-wide MXU (v6e/v7x); False on v2..v5."""
    try:
        kind = jax.devices()[0].device_kind.lower()
    except Exception:
        return True
    return not any(v in kind for v in ("v2", "v3", "v4", "v5"))


def _make_fused_mlp_kernel(hidden_true_dims):
    """Fused kernel: [Linear -> ReLU -> LayerNorm]* -> Linear.

    Ref order: (x, [w_l, bgb_l] * num_hidden, w_final, b_final, out).
    bgb_l is a packed [3, H_pad] array (row 0 bias, 1 gamma, 2 beta), zero in
    padded lanes. Weights may be bf16; everything else is f32.
    """
    num_hidden = len(hidden_true_dims)

    def kernel(*refs):
        x_ref = refs[0]
        o_ref = refs[-1]
        h = x_ref[...]                                        # [Bblk, F_pad] f32
        idx = 1
        for l in range(num_hidden):
            w_ref = refs[idx]                                 # [Din_pad, H_pad] (bf16 or f32)
            bgb = refs[idx + 1][...]                          # [3, H_pad] f32
            idx += 2
            b = bgb[0:1, :]
            g = bgb[1:2, :]
            beta = bgb[2:3, :]
            h_true = hidden_true_dims[l]

            # Linear (MXU, f32 accumulation) + bias, then ReLU. Cast LHS to the
            # weight dtype so bf16 weights take the single-pass MXU path.
            y = jnp.dot(h.astype(w_ref.dtype), w_ref[...],
                        preferred_element_type=jnp.float32) + b
            y = jnp.maximum(y, 0.0)

            # LayerNorm over the TRUE hidden width. Padded lanes of y are
            # exactly 0 (zero weight columns + zero bias -> ReLU(0) = 0), so
            # plain sums over the padded width equal sums over the true width:
            # no lane mask needed. One-pass variance E[y^2] - mean^2.
            inv_h = 1.0 / float(h_true)
            mean = jnp.sum(y, axis=-1, keepdims=True) * inv_h
            ey2 = jnp.sum(y * y, axis=-1, keepdims=True) * inv_h
            var = ey2 - mean * mean
            # gamma/beta are zero in padded lanes -> padded lanes of h stay 0.
            h = (y - mean) * jax.lax.rsqrt(var + LN_EPS) * g + beta
            # (eval-mode Dropout == identity)

        w_f_ref = refs[idx]                                   # [H_pad, A_pad]
        b_f = refs[idx + 1][...]                              # [1, A_pad] f32
        o_ref[...] = jnp.dot(h.astype(w_f_ref.dtype), w_f_ref[...],
                             preferred_element_type=jnp.float32) + b_f

    return kernel


def init_dqn_params(key, state_dim, action_dim, hidden_sizes):
    """Deterministic init mirroring PyTorch shapes (Linear weights stored [in, out])."""
    params = []
    cur = state_dim
    for h in hidden_sizes:
        key, kw, kb = jax.random.split(key, 3)
        bound = 1.0 / math.sqrt(cur)
        w = jax.random.uniform(kw, (cur, h), jnp.float32, -bound, bound)
        b = jax.random.uniform(kb, (h,), jnp.float32, -bound, bound)
        gamma = jnp.ones((h,), jnp.float32)
        beta = jnp.zeros((h,), jnp.float32)
        params.append(("hidden", w, b, gamma, beta))
        cur = h
    key, kw, kb = jax.random.split(key, 3)
    bound = 1.0 / math.sqrt(cur)
    w = jax.random.uniform(kw, (cur, action_dim), jnp.float32, -bound, bound)
    b = jax.random.uniform(kb, (action_dim,), jnp.float32, -bound, bound)
    params.append(("final", w, b))
    return params


def dqn_apply(x, params, *, weight_dtype=jnp.bfloat16):
    """Fused Pallas forward. Matches PyTorch: x.dim()==1 -> unsqueeze(0)."""
    if x.ndim == 1:
        x = x[None, :]
    x = x.astype(jnp.float32)
    B, F = x.shape

    hidden_true = tuple(p[1].shape[1] for p in params if p[0] == "hidden")
    action_dim = params[-1][1].shape[1]

    # Batch (sublane) padding and block choice:
    #   * block cap 256 on 256-wide MXU chips (v6e/v7x), 128 on v5e,
    #   * moderate batches split in two so v7x's 2nd TensorCore gets a block.
    blk_cap = 256 if _mxu_is_256() else 128
    B_pad = _round_up(max(B, 1), SUBLANE)
    if B_pad > blk_cap:
        B_blk = blk_cap
        B_pad = _round_up(B_pad, B_blk)
    elif B_pad >= 64 and (B_pad // 2) % SUBLANE == 0:
        B_blk = B_pad // 2          # >= 2 grid steps for megacore sharding
    else:
        B_blk = B_pad

    F_pad = _round_up(F, LANE)
    A_pad = _round_up(action_dim, LANE)

    x_pad = jnp.pad(x, ((0, B_pad - B), (0, F_pad - F)))

    flat_inputs = [x_pad]
    in_specs = [pl.BlockSpec((B_blk, F_pad), lambda i: (i, 0))]

    # Grid-invariant inputs: single-buffer them (double-buffering a constant
    # block only doubles the weight VMEM footprint).
    resident = pl.Buffered(1)

    for layer in params:
        if layer[0] == "hidden":
            _, w, b, g, beta = layer
            din, dout = w.shape
            dinp, doutp = _round_up(din, LANE), _round_up(dout, LANE)
            w_p = _pad2(w, dinp, doutp).astype(weight_dtype)
            bgb = jnp.zeros((3, doutp), jnp.float32)
            bgb = bgb.at[0, :dout].set(b).at[1, :dout].set(g).at[2, :dout].set(beta)
            flat_inputs += [w_p, bgb]
            in_specs += [
                pl.BlockSpec((dinp, doutp), lambda i: (0, 0), pipeline_mode=resident),
                pl.BlockSpec((3, doutp), lambda i: (0, 0), pipeline_mode=resident),
            ]
        else:
            _, w, b = layer
            din, dout = w.shape
            dinp, doutp = _round_up(din, LANE), _round_up(dout, LANE)
            w_p = _pad2(w, dinp, doutp).astype(weight_dtype)
            b_p = jnp.zeros((1, doutp), jnp.float32).at[0, :dout].set(b)
            flat_inputs += [w_p, b_p]
            in_specs += [
                pl.BlockSpec((dinp, doutp), lambda i: (0, 0), pipeline_mode=resident),
                pl.BlockSpec((1, doutp), lambda i: (0, 0), pipeline_mode=resident),
            ]

    kernel = _make_fused_mlp_kernel(hidden_true)

    # Explicit VMEM budget: single-buffered params + double-buffered x/out
    # blocks + activation headroom, clamped to [16 MiB, 64 MiB] (64 MiB = v7x
    # physical; v5e/v6e have 128 MiB so 64 MiB is always safe).
    param_bytes = sum(int(a.size) * a.dtype.itemsize for a in flat_inputs[1:])
    io_bytes = 2 * (B_blk * F_pad + B_blk * A_pad) * 4
    widest = max((F_pad, A_pad) + tuple(_round_up(h, LANE) for h in hidden_true))
    act_bytes = 4 * B_blk * widest * 4
    vmem_limit = int(1.5 * (param_bytes + io_bytes + act_bytes)) + (4 << 20)
    vmem_limit = max(16 << 20, min(vmem_limit, 64 << 20))

    out_pad = pl.pallas_call(
        kernel,
        out_shape=jax.ShapeDtypeStruct((B_pad, A_pad), jnp.float32),
        grid=(B_pad // B_blk,),
        in_specs=in_specs,
        out_specs=pl.BlockSpec((B_blk, A_pad), lambda i: (i, 0)),
        compiler_params=pltpu.CompilerParams(
            dimension_semantics=("parallel",),
            vmem_limit_bytes=vmem_limit),
    )(*flat_inputs)

    return out_pad[:B, :action_dim]


def dqn_reference(x, params):
    """Pure-JAX (f32) reference for correctness check."""
    if x.ndim == 1:
        x = x[None, :]
    h = x.astype(jnp.float32)
    for layer in params:
        if layer[0] == "hidden":
            _, w, b, g, beta = layer
            y = jnp.maximum(h @ w + b, 0.0)
            mean = jnp.mean(y, axis=-1, keepdims=True)
            var = jnp.mean(jnp.square(y - mean), axis=-1, keepdims=True)
            h = (y - mean) / jnp.sqrt(var + LN_EPS) * g + beta
        else:
            _, w, b = layer
            h = h @ w + b
    return h


if __name__ == "__main__":
    key = jax.random.PRNGKey(0)
    state_dim, action_dim = 16, 4
    hidden_sizes = [32, 32]
    batch = 2

    kp, kx = jax.random.split(key)
    params = init_dqn_params(kp, state_dim, action_dim, hidden_sizes)
    x = jax.random.normal(kx, (batch, state_dim), jnp.float32)
    q_ref = dqn_reference(x, params)

    # Tight check: f32 weights (exercises the same fused kernel structure).
    q_f32 = jax.block_until_ready(dqn_apply(x, params, weight_dtype=jnp.float32))
    assert q_f32.shape == (batch, action_dim), q_f32.shape
    assert jnp.allclose(q_f32, q_ref, atol=2e-5, rtol=2e-5), (q_f32, q_ref)

    # Performance path: bf16 weights, f32 accumulation (looser tolerance).
    q_bf16 = jax.block_until_ready(dqn_apply(x, params))
    assert q_bf16.shape == (batch, action_dim), q_bf16.shape
    assert jnp.allclose(q_bf16, q_ref, atol=5e-2, rtol=5e-2), (q_bf16, q_ref)

    # 1-D input path (PyTorch unsqueeze(0) semantics).
    q1 = jax.block_until_ready(dqn_apply(x[0], params))
    assert q1.shape == (1, action_dim)
    assert jnp.allclose(q1, dqn_reference(x[0], params), atol=5e-2, rtol=5e-2)

    print("KERNEL_OK")
</pallas_src>

<mosaic_0001>
module attributes {stable_mosaic.version = 11 : i64} {
  func.func @kernel(%arg0: i32, %arg1: memref<8x128xf32, #tpu.memory_space<vmem>>, %arg2: memref<128x128xf32, #tpu.memory_space<vmem>>, %arg3: memref<3x128xf32, #tpu.memory_space<vmem>>, %arg4: memref<128x128xf32, #tpu.memory_space<vmem>>, %arg5: memref<3x128xf32, #tpu.memory_space<vmem>>, %arg6: memref<128x128xf32, #tpu.memory_space<vmem>>, %arg7: memref<1x128xf32, #tpu.memory_space<vmem>>, %arg8: memref<8x128xf32, #tpu.memory_space<vmem>>) attributes {dimension_semantics = [#tpu.dimension_semantics<parallel>], iteration_bounds = array<i64: 1>, scalar_prefetch = 0 : i64, scratch_operands = 0 : i64, tpu.core_type = #tpu.core_type<tc>, window_params = [{transform_indices = @transform_0, window_bounds = array<i64: 8, 128>}, {pipeline_mode = #tpu.pipeline_mode<synchronous>, transform_indices = @transform_1, window_bounds = array<i64: 128, 128>}, {pipeline_mode = #tpu.pipeline_mode<synchronous>, transform_indices = @transform_2, window_bounds = array<i64: 3, 128>}, {pipeline_mode = #tpu.pipeline_mode<synchronous>, transform_indices = @transform_3, window_bounds = array<i64: 128, 128>}, {pipeline_mode = #tpu.pipeline_mode<synchronous>, transform_indices = @transform_4, window_bounds = array<i64: 3, 128>}, {pipeline_mode = #tpu.pipeline_mode<synchronous>, transform_indices = @transform_5, window_bounds = array<i64: 128, 128>}, {pipeline_mode = #tpu.pipeline_mode<synchronous>, transform_indices = @transform_6, window_bounds = array<i64: 1, 128>}, {transform_indices = @transform_7, window_bounds = array<i64: 8, 128>}]} {
    %c0 = arith.constant 0 : index
    %c0_0 = arith.constant 0 : index
    %0 = vector.load %arg1[%c0, %c0_0] : memref<8x128xf32, #tpu.memory_space<vmem>>, vector<8x128xf32>
    %c0_1 = arith.constant 0 : index
    %c0_2 = arith.constant 0 : index
    %1 = vector.load %arg3[%c0_1, %c0_2] : memref<3x128xf32, #tpu.memory_space<vmem>>, vector<3x128xf32>
    %2 = vector.extract_strided_slice %1 {offsets = [0, 0], sizes = [1, 128], strides = [1, 1]} : vector<3x128xf32> to vector<1x128xf32>
    %3 = vector.extract_strided_slice %1 {offsets = [1, 0], sizes = [1, 128], strides = [1, 1]} : vector<3x128xf32> to vector<1x128xf32>
    %4 = vector.extract_strided_slice %1 {offsets = [2, 0], sizes = [1, 128], strides = [1, 1]} : vector<3x128xf32> to vector<1x128xf32>
    %c0_3 = arith.constant 0 : index
    %c0_4 = arith.constant 0 : index
    %5 = vector.load %arg2[%c0_3, %c0_4] : memref<128x128xf32, #tpu.memory_space<vmem>>, vector<128x128xf32>
    %cst = arith.constant dense<0.000000e+00> : vector<8x128xf32>
    %6 = tpu.matmul %0, %5, %cst {dimension_numbers = #tpu.dot_dimension_numbers<[1], [0], [0], [1], [0, 0, 1, 1], [], []>} : vector<8x128xf32>, vector<128x128xf32>, vector<8x128xf32> -> vector<8x128xf32>
    %7 = vector.broadcast %2 : vector<1x128xf32> to vector<8x128xf32>
    %8 = arith.addf %6, %7 : vector<8x128xf32>
    %cst_5 = arith.constant 0.000000e+00 : f32
    %9 = vector.broadcast %cst_5 : f32 to vector<8x128xf32>
    %10 = arith.maximumf %8, %9 : vector<8x128xf32>
    %cst_6 = arith.constant dense<0.000000e+00> : vector<8xf32>
    %11 = vector.multi_reduction <add>, %10, %cst_6 [1] : vector<8x128xf32> to vector<8xf32>
    %12 = vector.shape_cast %11 : vector<8xf32> to vector<8x1xf32>
    %cst_7 = arith.constant 3.125000e-02 : f32
    %13 = vector.broadcast %cst_7 : f32 to vector<8x1xf32>
    %14 = arith.mulf %12, %13 : vector<8x1xf32>
    %15 = arith.mulf %10, %10 : vector<8x128xf32>
    %cst_8 = arith.constant dense<0.000000e+00> : vector<8xf32>
    %16 = vector.multi_reduction <add>, %15, %cst_8 [1] : vector<8x128xf32> to vector<8xf32>
    %17 = vector.shape_cast %16 : vector<8xf32> to vector<8x1xf32>
    %cst_9 = arith.constant 3.125000e-02 : f32
    %18 = vector.broadcast %cst_9 : f32 to vector<8x1xf32>
    %19 = arith.mulf %17, %18 : vector<8x1xf32>
    %20 = arith.mulf %14, %14 : vector<8x1xf32>
    %21 = arith.subf %19, %20 : vector<8x1xf32>
    %22 = vector.broadcast %14 : vector<8x1xf32> to vector<8x128xf32>
    %23 = arith.subf %10, %22 : vector<8x128xf32>
    %cst_10 = arith.constant 9.99999974E-6 : f32
    %24 = vector.broadcast %cst_10 : f32 to vector<8x1xf32>
    %25 = arith.addf %21, %24 : vector<8x1xf32>
    %26 = math.rsqrt %25 : vector<8x1xf32>
    %27 = vector.broadcast %26 : vector<8x1xf32> to vector<8x128xf32>
    %28 = arith.mulf %23, %27 : vector<8x128xf32>
    %29 = vector.broadcast %3 : vector<1x128xf32> to vector<8x128xf32>
    %30 = arith.mulf %28, %29 : vector<8x128xf32>
    %31 = vector.broadcast %4 : vector<1x128xf32> to vector<8x128xf32>
    %32 = arith.addf %30, %31 : vector<8x128xf32>
    %c0_11 = arith.constant 0 : index
    %c0_12 = arith.constant 0 : index
    %33 = vector.load %arg5[%c0_11, %c0_12] : memref<3x128xf32, #tpu.memory_space<vmem>>, vector<3x128xf32>
    %34 = vector.extract_strided_slice %33 {offsets = [0, 0], sizes = [1, 128], strides = [1, 1]} : vector<3x128xf32> to vector<1x128xf32>
    %35 = vector.extract_strided_slice %33 {offsets = [1, 0], sizes = [1, 128], strides = [1, 1]} : vector<3x128xf32> to vector<1x128xf32>
    %36 = vector.extract_strided_slice %33 {offsets = [2, 0], sizes = [1, 128], strides = [1, 1]} : vector<3x128xf32> to vector<1x128xf32>
    %c0_13 = arith.constant 0 : index
    %c0_14 = arith.constant 0 : index
    %37 = vector.load %arg4[%c0_13, %c0_14] : memref<128x128xf32, #tpu.memory_space<vmem>>, vector<128x128xf32>
    %cst_15 = arith.constant dense<0.000000e+00> : vector<8x128xf32>
    %38 = tpu.matmul %32, %37, %cst_15 {dimension_numbers = #tpu.dot_dimension_numbers<[1], [0], [0], [1], [0, 0, 1, 1], [], []>} : vector<8x128xf32>, vector<128x128xf32>, vector<8x128xf32> -> vector<8x128xf32>
    %39 = vector.broadcast %34 : vector<1x128xf32> to vector<8x128xf32>
    %40 = arith.addf %38, %39 : vector<8x128xf32>
    %cst_16 = arith.constant 0.000000e+00 : f32
    %41 = vector.broadcast %cst_16 : f32 to vector<8x128xf32>
    %42 = arith.maximumf %40, %41 : vector<8x128xf32>
    %cst_17 = arith.constant dense<0.000000e+00> : vector<8xf32>
    %43 = vector.multi_reduction <add>, %42, %cst_17 [1] : vector<8x128xf32> to vector<8xf32>
    %44 = vector.shape_cast %43 : vector<8xf32> to vector<8x1xf32>
    %cst_18 = arith.constant 3.125000e-02 : f32
    %45 = vector.broadcast %cst_18 : f32 to vector<8x1xf32>
    %46 = arith.mulf %44, %45 : vector<8x1xf32>
    %47 = arith.mulf %42, %42 : vector<8x128xf32>
    %cst_19 = arith.constant dense<0.000000e+00> : vector<8xf32>
    %48 = vector.multi_reduction <add>, %47, %cst_19 [1] : vector<8x128xf32> to vector<8xf32>
    %49 = vector.shape_cast %48 : vector<8xf32> to vector<8x1xf32>
    %cst_20 = arith.constant 3.125000e-02 : f32
    %50 = vector.broadcast %cst_20 : f32 to vector<8x1xf32>
    %51 = arith.mulf %49, %50 : vector<8x1xf32>
    %52 = arith.mulf %46, %46 : vector<8x1xf32>
    %53 = arith.subf %51, %52 : vector<8x1xf32>
    %54 = vector.broadcast %46 : vector<8x1xf32> to vector<8x128xf32>
    %55 = arith.subf %42, %54 : vector<8x128xf32>
    %cst_21 = arith.constant 9.99999974E-6 : f32
    %56 = vector.broadcast %cst_21 : f32 to vector<8x1xf32>
    %57 = arith.addf %53, %56 : vector<8x1xf32>
    %58 = math.rsqrt %57 : vector<8x1xf32>
    %59 = vector.broadcast %58 : vector<8x1xf32> to vector<8x128xf32>
    %60 = arith.mulf %55, %59 : vector<8x128xf32>
    %61 = vector.broadcast %35 : vector<1x128xf32> to vector<8x128xf32>
    %62 = arith.mulf %60, %61 : vector<8x128xf32>
    %63 = vector.broadcast %36 : vector<1x128xf32> to vector<8x128xf32>
    %64 = arith.addf %62, %63 : vector<8x128xf32>
    %c0_22 = arith.constant 0 : index
    %c0_23 = arith.constant 0 : index
    %65 = vector.load %arg7[%c0_22, %c0_23] : memref<1x128xf32, #tpu.memory_space<vmem>>, vector<1x128xf32>
    %c0_24 = arith.constant 0 : index
    %c0_25 = arith.constant 0 : index
    %66 = vector.load %arg6[%c0_24, %c0_25] : memref<128x128xf32, #tpu.memory_space<vmem>>, vector<128x128xf32>
    %cst_26 = arith.constant dense<0.000000e+00> : vector<8x128xf32>
    %67 = tpu.matmul %64, %66, %cst_26 {dimension_numbers = #tpu.dot_dimension_numbers<[1], [0], [0], [1], [0, 0, 1, 1], [], []>} : vector<8x128xf32>, vector<128x128xf32>, vector<8x128xf32> -> vector<8x128xf32>
    %68 = vector.broadcast %65 : vector<1x128xf32> to vector<8x128xf32>
    %69 = arith.addf %67, %68 : vector<8x128xf32>
    %c0_27 = arith.constant 0 : index
    %c0_28 = arith.constant 0 : index
    %70 = vector.load %arg8[%c0_27, %c0_28] : memref<8x128xf32, #tpu.memory_space<vmem>>, vector<8x128xf32>
    tpu.vector_store %arg8[%c0_27, %c0_28], %69 {strides = array<i32>} : memref<8x128xf32, #tpu.memory_space<vmem>>, vector<8x128xf32>,
    return
  }
  func.func @transform_0(%arg0: i32) -> (i32, i32) {
    %c0_i32 = arith.constant 0 : i32
    %c0_i32_0 = arith.constant 0 : i32
    return %arg0, %c0_i32 : i32, i32
  }
  func.func @transform_1(%arg0: i32) -> (i32, i32) {
    %c0_i32 = arith.constant 0 : i32
    %c0_i32_0 = arith.constant 0 : i32
    %c0_i32_1 = arith.constant 0 : i32
    return %c0_i32, %c0_i32_0 : i32, i32
  }
  func.func @transform_2(%arg0: i32) -> (i32, i32) {
    %c0_i32 = arith.constant 0 : i32
    %c0_i32_0 = arith.constant 0 : i32
    %c0_i32_1 = arith.constant 0 : i32
    return %c0_i32, %c0_i32_0 : i32, i32
  }
  func.func @transform_3(%arg0: i32) -> (i32, i32) {
    %c0_i32 = arith.constant 0 : i32
    %c0_i32_0 = arith.constant 0 : i32
    %c0_i32_1 = arith.constant 0 : i32
    return %c0_i32, %c0_i32_0 : i32, i32
  }
  func.func @transform_4(%arg0: i32) -> (i32, i32) {
    %c0_i32 = arith.constant 0 : i32
    %c0_i32_0 = arith.constant 0 : i32
    %c0_i32_1 = arith.constant 0 : i32
    return %c0_i32, %c0_i32_0 : i32, i32
  }
  func.func @transform_5(%arg0: i32) -> (i32, i32) {
    %c0_i32 = arith.constant 0 : i32
    %c0_i32_0 = arith.constant 0 : i32
    %c0_i32_1 = arith.constant 0 : i32
    return %c0_i32, %c0_i32_0 : i32, i32
  }
  func.func @transform_6(%arg0: i32) -> (i32, i32) {
    %c0_i32 = arith.constant 0 : i32
    %c0_i32_0 = arith.constant 0 : i32
    %c0_i32_1 = arith.constant 0 : i32
    return %c0_i32, %c0_i32_0 : i32, i32
  }
  func.func @transform_7(%arg0: i32) -> (i32, i32) {
    %c0_i32 = arith.constant 0 : i32
    %c0_i32_0 = arith.constant 0 : i32
    return %arg0, %c0_i32 : i32, i32
  }
}

</mosaic_0001>

<llo_original>
// kernel: tpu_custom_call.1
$region0: #{tpu_custom_call.1}
  #allocation0 [shape = 'u32[]', space=smem, size = 0x4, offset = 0x4, fixed_abs, tag = 'smem constant byte address 0x4 - core index']
  #allocation1 [shape = 'u32[72,128]{1,0:T(1,128)}', space=vmem, size = 0x9000, scoped, tag = 'internal scratch']
  %s0 = inlined_call_operand.hbm [shape: f32[8,128], index: 0, kind: input, shape index: {}]
  %s1 = inlined_call_operand.hbm [shape: f32[128,128], index: 1, kind: input, shape index: {}]
  %s2 = inlined_call_operand.hbm [shape: f32[3,128], index: 2, kind: input, shape index: {}]
  %s3 = inlined_call_operand.hbm [shape: f32[128,128], index: 3, kind: input, shape index: {}]
  %s4 = inlined_call_operand.hbm [shape: f32[3,128], index: 4, kind: input, shape index: {}]
  %s5 = inlined_call_operand.hbm [shape: f32[128,128], index: 5, kind: input, shape index: {}]
  %s6 = inlined_call_operand.vmem [shape: f32[1,128], index: 6, kind: input, shape index: {}]
  %s7 = inlined_call_operand.hbm [shape: f32[8,128], index: 7, kind: output, shape index: {}]
  %s8 = sld [smem:[#allocation0]]
  $region62: #{tpu_custom_call.1} parent=0
    _
  %s10 = ssub.s32 1, %s8
  %s11 = scalar_select 0, %s10, %s8
  $region1: #{tpu_custom_call.1} parent=0
    #allocation2 [shape = 'u8[4096]{0}', space=vmem, size = 0x1000, scoped, tag = 'input window, operand 0, single buffered']
    #allocation3 [shape = 's32[1]{0}', space=sflag, size = 0x4, scoped, tag = 'scoped memory for tpu_custom_call.1']
    #allocation4 [shape = 's32[1]{0}', space=sflag, size = 0x4, scoped, tag = 'scoped memory for tpu_custom_call.1']
    #allocation5 [shape = 'u8[65536]{0}', space=vmem, size = 0x10000, scoped, tag = 'input window, operand 1, single buffered']
    #allocation6 [shape = 's32[1]{0}', space=sflag, size = 0x4, scoped, tag = 'scoped memory for tpu_custom_call.1']
    #allocation7 [shape = 'u8[2048]{0}', space=vmem, size = 0x800, scoped, tag = 'input window, operand 2, single buffered']
    #allocation8 [shape = 'u8[65536]{0}', space=vmem, size = 0x10000, scoped, tag = 'input window, operand 3, single buffered']
    #allocation9 [shape = 's32[1]{0}', space=sflag, size = 0x4, scoped, tag = 'scoped memory for tpu_custom_call.1']
    #allocation10 [shape = 'u8[2048]{0}', space=vmem, size = 0x800, scoped, tag = 'input window, operand 4, single buffered']
    #allocation11 [shape = 'u8[65536]{0}', space=vmem, size = 0x10000, scoped, tag = 'input window, operand 5, single buffered']
    #allocation12 [shape = 's32[1]{0}', space=sflag, size = 0x4, scoped, tag = 'scoped memory for tpu_custom_call.1']
    #allocation13 [shape = 'u8[4096]{0}', space=vmem, size = 0x1000, scoped, tag = 'output window, operand 0, single buffered']
    %12 = vsyncpa [#allocation3], 0
    %13 = vsyncpa [#allocation6], 0
    %14 = vsyncpa [#allocation9], 0
    %15 = vsyncpa [#allocation12], 0
    %16 = vsyncpa [#allocation4], 0
    // Predicated region
    $region2: #{tpu_custom_call.1} parent=1 // pred_check
      _
    $region3: #{tpu_custom_call.1} parent=1 // pred_check_branch
      %18 = sbr.rel (0) target = $region5
    $region4: #{tpu_custom_call.1} parent=1 // pred_region
      %20 = vsyncadd [#allocation3], 0
      %s22 = sshll.u32 %s0, 4
      %s23 = int_to_ptr.hbm [resolvable:$true] %s22
      %s24 = sshll.u32 [#allocation2], 4
      %s25 = int_to_ptr.vmem [resolvable:$true] %s24
      %27 = dma.hbm_to_vmem [thread:$0]  %s23, 128, %s25, [#allocation3]
    $region5: #{tpu_custom_call.1} parent=1 // pred_fallthru
      _
    // Predicated region
    $region6: #{tpu_custom_call.1} parent=1 // pred_check
      _
    $region7: #{tpu_custom_call.1} parent=1 // pred_check_branch
      %29 = sbr.rel (0) target = $region9
    $region8: #{tpu_custom_call.1} parent=1 // pred_region
      %31 = vsyncadd [#allocation6], 0
      %s32 = sshll.u32 %s1, 4
      %s33 = int_to_ptr.hbm [resolvable:$true] %s32
      %s34 = sshll.u32 [#allocation5], 4
      %s35 = int_to_ptr.vmem [resolvable:$true] %s34
      %40 = dma.hbm_to_vmem [thread:$0]  %s33, 2048, %s35, [#allocation6], 128, 128, 8
    $region9: #{tpu_custom_call.1} parent=1 // pred_fallthru
      _
    // Predicated region
    $region10: #{tpu_custom_call.1} parent=1 // pred_check
      _
    $region11: #{tpu_custom_call.1} parent=1 // pred_check_branch
      %42 = sbr.rel (0) target = $region13
    $region12: #{tpu_custom_call.1} parent=1 // pred_region
      %44 = vsyncadd [#allocation6], 0
      %s46 = sshll.u32 %s2, 4
      %s47 = int_to_ptr.hbm [resolvable:$true] %s46
      %s48 = sshll.u32 [#allocation7], 4
      %s49 = int_to_ptr.vmem [resolvable:$true] %s48
      %51 = dma.hbm_to_vmem [thread:$0]  %s47, 64, %s49, [#allocation6]
    $region13: #{tpu_custom_call.1} parent=1 // pred_fallthru
      _
    // Predicated region
    $region14: #{tpu_custom_call.1} parent=1 // pred_check
      _
    $region15: #{tpu_custom_call.1} parent=1 // pred_check_branch
      %53 = sbr.rel (0) target = $region17
    $region16: #{tpu_custom_call.1} parent=1 // pred_region
      %55 = vsyncadd [#allocation9], 0
      %s56 = sshll.u32 %s3, 4
      %s57 = int_to_ptr.hbm [resolvable:$true] %s56
      %s58 = sshll.u32 [#allocation8], 4
      %s59 = int_to_ptr.vmem [resolvable:$true] %s58
      %64 = dma.hbm_to_vmem [thread:$0]  %s57, 2048, %s59, [#allocation9], 128, 128, 8
    $region17: #{tpu_custom_call.1} parent=1 // pred_fallthru
      _
    // Predicated region
    $region18: #{tpu_custom_call.1} parent=1 // pred_check
      _
    $region19: #{tpu_custom_call.1} parent=1 // pred_check_branch
      %66 = sbr.rel (0) target = $region21
    $region20: #{tpu_custom_call.1} parent=1 // pred_region
      %68 = vsyncadd [#allocation9], 0
      %s70 = sshll.u32 %s4, 4
      %s71 = int_to_ptr.hbm [resolvable:$true] %s70
      %s72 = sshll.u32 [#allocation10], 4
      %s73 = int_to_ptr.vmem [resolvable:$true] %s72
      %75 = dma.hbm_to_vmem [thread:$0]  %s71, 64, %s73, [#allocation9]
    $region21: #{tpu_custom_call.1} parent=1 // pred_fallthru
      _
    // Predicated region
    $region22: #{tpu_custom_call.1} parent=1 // pred_check
      _
    $region23: #{tpu_custom_call.1} parent=1 // pred_check_branch
      %77 = sbr.rel (0) target = $region25
    $region24: #{tpu_custom_call.1} parent=1 // pred_region
      %79 = vsyncadd [#allocation12], 0
      %s80 = sshll.u32 %s5, 4
      %s81 = int_to_ptr.hbm [resolvable:$true] %s80
      %s82 = sshll.u32 [#allocation11], 4
      %s83 = int_to_ptr.vmem [resolvable:$true] %s82
      %88 = dma.hbm_to_vmem [thread:$0]  %s81, 2048, %s83, [#allocation12], 128, 128, 8
    $region25: #{tpu_custom_call.1} parent=1 // pred_fallthru
      _
    // Predicated region
    $region26: #{tpu_custom_call.1} parent=1 // pred_check
      _
    $region27: #{tpu_custom_call.1} parent=1 // pred_check_branch
      %90 = sbr.rel (0) target = $region29
    $region28: #{tpu_custom_call.1} parent=1 // pred_region
      _
    $region29: #{tpu_custom_call.1} parent=1 // pred_fallthru
      _
    // Predicated region
    $region30: #{tpu_custom_call.1} parent=1 // pred_check
      _
    $region31: #{tpu_custom_call.1} parent=1 // pred_check_branch
      %92 = sbr.rel (0) target = $region33
    $region32: #{tpu_custom_call.1} parent=1 // pred_region
      %94 = dma.done [#allocation3], 128
    $region33: #{tpu_custom_call.1} parent=1 // pred_fallthru
      _
    // Predicated region
    $region34: #{tpu_custom_call.1} parent=1 // pred_check
      _
    $region35: #{tpu_custom_call.1} parent=1 // pred_check_branch
      %96 = sbr.rel (0) target = $region37
    $region36: #{tpu_custom_call.1} parent=1 // pred_region
      %98 = dma.done [#allocation6], 2048
    $region37: #{tpu_custom_call.1} parent=1 // pred_fallthru
      _
    // Predicated region
    $region38: #{tpu_custom_call.1} parent=1 // pred_check
      _
    $region39: #{tpu_custom_call.1} parent=1 // pred_check_branch
      %100 = sbr.rel (0) target = $region41
    $region40: #{tpu_custom_call.1} parent=1 // pred_region
      %102 = dma.done [#allocation6], 64
    $region41: #{tpu_custom_call.1} parent=1 // pred_fallthru
      _
    // Predicated region
    $region42: #{tpu_custom_call.1} parent=1 // pred_check
      _
    $region43: #{tpu_custom_call.1} parent=1 // pred_check_branch
      %104 = sbr.rel (0) target = $region45
    $region44: #{tpu_custom_call.1} parent=1 // pred_region
      %106 = dma.done [#allocation9], 2048
    $region45: #{tpu_custom_call.1} parent=1 // pred_fallthru
      _
    // Predicated region
    $region46: #{tpu_custom_call.1} parent=1 // pred_check
      _
    $region47: #{tpu_custom_call.1} parent=1 // pred_check_branch
      %108 = sbr.rel (0) target = $region49
    $region48: #{tpu_custom_call.1} parent=1 // pred_region
      %110 = dma.done [#allocation9], 64
    $region49: #{tpu_custom_call.1} parent=1 // pred_fallthru
      _
    // Predicated region
    $region50: #{tpu_custom_call.1} parent=1 // pred_check
      _
    $region51: #{tpu_custom_call.1} parent=1 // pred_check_branch
      %112 = sbr.rel (0) target = $region53
    $region52: #{tpu_custom_call.1} parent=1 // pred_region
      %114 = dma.done [#allocation12], 2048
    $region53: #{tpu_custom_call.1} parent=1 // pred_fallthru
      _
    %v115 = vld [vmem:[#allocation2] sm:$0xff]
    %v116 = vld [vmem:[#allocation7] sm:$0x7]
    %v117 = vld [vmem:[#allocation5] sm:$0xff]
    %v118 = vld [vmem:[#allocation5 + $0x8] sm:$0xff]
    %v119 = vld [vmem:[#allocation5 + $0x10] sm:$0xff]
    %v120 = vld [vmem:[#allocation5 + $0x18] sm:$0xff]
    %v121 = vld [vmem:[#allocation5 + $0x20] sm:$0xff]
    %v122 = vld [vmem:[#allocation5 + $0x28] sm:$0xff]
    %v123 = vld [vmem:[#allocation5 + $0x30] sm:$0xff]
    %v124 = vld [vmem:[#allocation5 + $0x38] sm:$0xff]
    %v125 = vld [vmem:[#allocation5 + $0x40] sm:$0xff]
    %v126 = vld [vmem:[#allocation5 + $0x48] sm:$0xff]
    %v127 = vld [vmem:[#allocation5 + $0x50] sm:$0xff]
    %v128 = vld [vmem:[#allocation5 + $0x58] sm:$0xff]
    %v129 = vld [vmem:[#allocation5 + $0x60] sm:$0xff]
    %v130 = vld [vmem:[#allocation5 + $0x68] sm:$0xff]
    %v131 = vld [vmem:[#allocation5 + $0x70] sm:$0xff]
    %v132 = vld [vmem:[#allocation5 + $0x78] sm:$0xff]
    %v133 = vperm.slane %v116, 0
    %134 = vmatpush.msra.mxu0 %v132
    %135 = vmatpush.msra.mxu0 %v131
    %136 = vmatpush.msra.mxu0 %v130
    %137 = vmatpush.msra.mxu0 %v129
    %138 = vmatpush.msra.mxu0 %v128
    %139 = vmatpush.msra.mxu0 %v127
    %140 = vmatpush.msra.mxu0 %v126
    %141 = vmatpush.msra.mxu0 %v125
    %142 = vmatpush.msra.mxu0 %v124
    %143 = vmatpush.msra.mxu0 %v123
    %144 = vmatpush.msra.mxu0 %v122
    %145 = vmatpush.msra.mxu0 %v121
    %146 = vmatpush.msra.mxu0 %v120
    %147 = vmatpush.msra.mxu0 %v119
    %148 = vmatpush.msra.mxu0 %v118
    %149 = vmatpush.msra.mxu0 %v117
    %150 = vmatmul.f32.gmra.mxu0 %v115
    %v151 = vpop.f32.mrf.mxu0
    %v152 = vadd.f32 %v133, %v151
    %153 = vdwg.mxu0
    %v154 = vmax.f32 %v152, 0.0
    %155 = vadd.xlane.f32.xlu0 %v154
    %v156 = vpop.xlane.xlu0 %155
    %v157 = vmul.f32 %v156, 0.03125
    %v158 = vmul.f32 %v154, %v154
    %159 = vadd.xlane.f32.xlu0 %v158
    %v160 = vpop.xlane.xlu0 %159
    %v161 = vmul.f32 %v160, 0.03125
    %v162 = vmul.f32 %v157, %v157
    %v163 = vsub.f32 %v161, %v162
    %v164 = vsub.f32 %v154, %v157
    %v165 = vadd.f32 %v163, 1e-05
    %v166 = vrsqrt.pop %v165
    %v167 = vmul.f32 %v166, %v165
    %v168 = vmul.f32 %v167, %v166
    %v169 = vmul.f32 0.5, %v168
    %v170 = vsub.f32 1.5, %v169
    %v171 = vmul.f32 %v166, %v170
    %vm172 = vweird.f32 %v165
    %vm173 = vweird.f32 %v166
    %vm174 = vmor %vm172, %vm173
    %v175 = vsel %vm174, %v166, %v171
    %v176 = vmul.f32 %v164, %v175
    %v177 = vperm.slane %v116, 1
    %v178 = vmul.f32 %v176, %v177
    %v179 = vperm.slane %v116, 2
    %v180 = vadd.f32 %v178, %v179
    %v181 = vld [vmem:[#allocation10] sm:$0x7]
    %v182 = vld [vmem:[#allocation8] sm:$0xff]
    %v183 = vld [vmem:[#allocation8 + $0x8] sm:$0xff]
    %v184 = vld [vmem:[#allocation8 + $0x10] sm:$0xff]
    %v185 = vld [vmem:[#allocation8 + $0x18] sm:$0xff]
    %v186 = vld [vmem:[#allocation8 + $0x20] sm:$0xff]
    %v187 = vld [vmem:[#allocation8 + $0x28] sm:$0xff]
    %v188 = vld [vmem:[#allocation8 + $0x30] sm:$0xff]
    %v189 = vld [vmem:[#allocation8 + $0x38] sm:$0xff]
    %v190 = vld [vmem:[#allocation8 + $0x40] sm:$0xff]
    %v191 = vld [vmem:[#allocation8 + $0x48] sm:$0xff]
    %v192 = vld [vmem:[#allocation8 + $0x50] sm:$0xff]
    %v193 = vld [vmem:[#allocation8 + $0x58] sm:$0xff]
    %v194 = vld [vmem:[#allocation8 + $0x60] sm:$0xff]
    %v195 = vld [vmem:[#allocation8 + $0x68] sm:$0xff]
    %v196 = vld [vmem:[#allocation8 + $0x70] sm:$0xff]
    %v197 = vld [vmem:[#allocation8 + $0x78] sm:$0xff]
    %v198 = vperm.slane %v181, 0
    %199 = vmatpush.msra.mxu0 %v197
    %200 = vmatpush.msra.mxu0 %v196
    %201 = vmatpush.msra.mxu0 %v195
    %202 = vmatpush.msra.mxu0 %v194
    %203 = vmatpush.msra.mxu0 %v193
    %204 = vmatpush.msra.mxu0 %v192
    %205 = vmatpush.msra.mxu0 %v191
    %206 = vmatpush.msra.mxu0 %v190
    %207 = vmatpush.msra.mxu0 %v189
    %208 = vmatpush.msra.mxu0 %v188
    %209 = vmatpush.msra.mxu0 %v187
    %210 = vmatpush.msra.mxu0 %v186
    %211 = vmatpush.msra.mxu0 %v185
    %212 = vmatpush.msra.mxu0 %v184
    %213 = vmatpush.msra.mxu0 %v183
    %214 = vmatpush.msra.mxu0 %v182
    %215 = vmatmul.f32.gmra.mxu0 %v180
    %v216 = vpop.f32.mrf.mxu0
    %v217 = vadd.f32 %v198, %v216
    %218 = vdwg.mxu0
    %v219 = vmax.f32 %v217, 0.0
    %220 = vadd.xlane.f32.xlu0 %v219
    %v221 = vpop.xlane.xlu0 %220
    %v222 = vmul.f32 %v221, 0.03125
    %v223 = vmul.f32 %v219, %v219
    %224 = vadd.xlane.f32.xlu0 %v223
    %v225 = vpop.xlane.xlu0 %224
    %v226 = vmul.f32 %v225, 0.03125
    %v227 = vmul.f32 %v222, %v222
    %v228 = vsub.f32 %v226, %v227
    %v229 = vsub.f32 %v219, %v222
    %v230 = vadd.f32 %v228, 1e-05
    %v231 = vrsqrt.pop %v230
    %v232 = vmul.f32 %v231, %v230
    %v233 = vmul.f32 %v232, %v231
    %v234 = vmul.f32 0.5, %v233
    %v235 = vsub.f32 1.5, %v234
    %v236 = vmul.f32 %v231, %v235
    %vm237 = vweird.f32 %v230
    %vm238 = vweird.f32 %v231
    %vm239 = vmor %vm237, %vm238
    %v240 = vsel %vm239, %v231, %v236
    %v241 = vmul.f32 %v229, %v240
    %v242 = vperm.slane %v181, 1
    %v243 = vmul.f32 %v241, %v242
    %v244 = vperm.slane %v181, 2
    %v245 = vadd.f32 %v243, %v244
    %v246 = vld [vmem:[%s6] sm:$0x1]
    %v247 = vld [vmem:[#allocation11] sm:$0xff]
    %v248 = vld [vmem:[#allocation11 + $0x8] sm:$0xff]
    %v249 = vld [vmem:[#allocation11 + $0x10] sm:$0xff]
    %v250 = vld [vmem:[#allocation11 + $0x18] sm:$0xff]
    %v251 = vld [vmem:[#allocation11 + $0x20] sm:$0xff]
    %v252 = vld [vmem:[#allocation11 + $0x28] sm:$0xff]
    %v253 = vld [vmem:[#allocation11 + $0x30] sm:$0xff]
    %v254 = vld [vmem:[#allocation11 + $0x38] sm:$0xff]
    %v255 = vld [vmem:[#allocation11 + $0x40] sm:$0xff]
    %v256 = vld [vmem:[#allocation11 + $0x48] sm:$0xff]
    %v257 = vld [vmem:[#allocation11 + $0x50] sm:$0xff]
    %v258 = vld [vmem:[#allocation11 + $0x58] sm:$0xff]
    %v259 = vld [vmem:[#allocation11 + $0x60] sm:$0xff]
    %v260 = vld [vmem:[#allocation11 + $0x68] sm:$0xff]
    %v261 = vld [vmem:[#allocation11 + $0x70] sm:$0xff]
    %v262 = vld [vmem:[#allocation11 + $0x78] sm:$0xff]
    %v264 = vperm.slane %v246, 0
    %266 = vmatpush.msra.mxu0 %v262
    %267 = vmatpush.msra.mxu0 %v261
    %268 = vmatpush.msra.mxu0 %v260
    %269 = vmatpush.msra.mxu0 %v259
    %270 = vmatpush.msra.mxu0 %v258
    %271 = vmatpush.msra.mxu0 %v257
    %272 = vmatpush.msra.mxu0 %v256
    %273 = vmatpush.msra.mxu0 %v255
    %274 = vmatpush.msra.mxu0 %v254
    %275 = vmatpush.msra.mxu0 %v253
    %276 = vmatpush.msra.mxu0 %v252
    %277 = vmatpush.msra.mxu0 %v251
    %278 = vmatpush.msra.mxu0 %v250
    %279 = vmatpush.msra.mxu0 %v249
    %280 = vmatpush.msra.mxu0 %v248
    %281 = vmatpush.msra.mxu0 %v247
    %282 = vmatmul.f32.gmra.mxu0 %v245
    %v283 = vpop.f32.mrf.mxu0
    %v284 = vadd.f32 %v264, %v283
    %285 = vdwg.mxu0
    %286 = vst [vmem:[#allocation13] sm:$0xff] %v284
    // Predicated region
    $region54: #{tpu_custom_call.1} parent=1 // pred_check
      _
    $region55: #{tpu_custom_call.1} parent=1 // pred_check_branch
      %288 = sbr.rel (0) target = $region57
    $region56: #{tpu_custom_call.1} parent=1 // pred_region
      %290 = vsyncadd [#allocation4], 0
      %s292 = sshll.u32 [#allocation13], 4
      %s293 = int_to_ptr.vmem [resolvable:$true] %s292
      %s294 = sshll.u32 %s7, 4
      %s295 = int_to_ptr.hbm [resolvable:$true] %s294
      %297 = dma.vmem_to_hbm [thread:$0]  %s293, 128, %s295, [#allocation4]
    $region57: #{tpu_custom_call.1} parent=1 // pred_fallthru
      _
    // Predicated region
    $region58: #{tpu_custom_call.1} parent=1 // pred_check
      _
    $region59: #{tpu_custom_call.1} parent=1 // pred_check_branch
      %299 = sbr.rel (0) target = $region61
    $region60: #{tpu_custom_call.1} parent=1 // pred_region
      %301 = dma.done [#allocation4], 128
    $region61: #{tpu_custom_call.1} parent=1 // pred_fallthru
      _
    %302 = vsyncpa [#allocation3], 1
    %303 = vsyncpa [#allocation6], 1
    %304 = vsyncpa [#allocation9], 1
    %305 = vsyncpa [#allocation12], 1
    %306 = vsyncpa [#allocation4], 1

</llo_original>
